<compile_context>
chip_gen: v7x
topology: tpu7x:2x2x1
jax: 0.10.0
libtpu: 0.0.40
codegen_flags: <defaults>
</compile_context>

<pallas_src>
import math

import jax
import jax.numpy as jnp
from jax.experimental import pallas as pl
from jax.experimental.pallas import tpu as pltpu


def _downsample_band_kernel(xm_ref, xh_ref, w_ref, b_ref, o_ref, band_ref):
    """One (batch, output-row-band) tile of the strided conv.

    xm_ref:   (1, th, Wb, 4C)  space-to-depth rows [i*th, i*th+th)
    xh_ref:   (1, 1,  Wb, 4C)  halo row i*th+th
    w_ref:    (4, 4C, Opad)    2x2-phase weight matrices, q = 2*dr + dc
    b_ref:    (1, Opad)        bias (f32, zero-padded)
    o_ref:    (1, th, Wo, Opad)
    band_ref: (th+1, Wb, 4C)   VMEM scratch holding band incl. halo row
    """
    th = xm_ref.shape[1]
    K4 = xm_ref.shape[3]
    Wo = o_ref.shape[2]
    Opad = o_ref.shape[3]

    # Assemble band (main rows + halo row) purely in VMEM.
    band_ref[pl.ds(0, th), :, :] = xm_ref[0]
    band_ref[pl.ds(th, 1), :, :] = xh_ref[0]

    acc = jnp.zeros((th * Wo, Opad), jnp.float32)
    # 2x2 stride-1 conv over the space-to-depth band == 4 shifted matmuls.
    for dr in range(2):
        for dc in range(2):
            tile = band_ref[pl.ds(dr, th), pl.ds(dc, Wo), :]      # (th, Wo, 4C)
            acc = acc + jnp.dot(tile.reshape(th * Wo, K4),
                                w_ref[2 * dr + dc],
                                preferred_element_type=jnp.float32)
    acc = acc + b_ref[...]
    o_ref[0] = acc.reshape(th, Wo, Opad).astype(o_ref.dtype)


def _round_up(x, m):
    return ((x + m - 1) // m) * m


def _vmem_footprint_bytes(th, Wb, K4, Wo, Opad, itemsize):
    band_in = th * Wb * K4 * itemsize
    halo_in = Wb * K4 * itemsize
    w_b = 4 * K4 * Opad * itemsize
    bias_b = Opad * 4
    out_b = th * Wo * Opad * itemsize
    scratch = (th + 1) * Wb * K4 * itemsize
    work = 2 * th * Wo * Opad * 4                 # f32 accumulator + temporaries
    # pipeline double-buffers the streamed inputs/outputs
    return 2 * (band_in + halo_in + w_b + bias_b + out_b) + scratch + work


def _choose_band_rows(B, Ho, Wo, Wb, K4, Opad, itemsize):
    """Largest divisor of Ho whose per-step VMEM footprint fits a conservative
    budget (also fits v7x's 64 MiB physical VMEM), while keeping >=2 grid
    steps when possible so both v7x TensorCores get work."""
    budget = 20 * 1024 * 1024
    m_cap = 4096                                   # matmul rows per band
    best = 1
    for th in range(1, Ho + 1):
        if Ho % th:
            continue
        if B * (Ho // th) < 2 and B * Ho >= 2:
            continue
        if th * Wo > m_cap:
            continue
        if _vmem_footprint_bytes(th, Wb, K4, Wo, Opad, itemsize) > budget:
            continue
        best = max(best, th)
    return best


def downsample_forward(x, weight, bias):
    """x: (B, L, C), weight: (O, C, 4, 4), bias: (O,) -> (B, (H/2)*(W/2), O)."""
    B, L, C = x.shape
    H = W = int(math.isqrt(L))
    assert H * W == L, "L must be a perfect square"
    assert H % 2 == 0 and W % 2 == 0, "H, W must be even"
    O = weight.shape[0]
    Ho, Wo = H // 2, W // 2
    Hb, Wb = Ho + 1, Wo + 1
    K4 = 4 * C
    Opad = _round_up(O, 128)                       # lane-dense output channels
    dt = x.dtype
    itemsize = jnp.dtype(dt).itemsize

    # ---- glue: pad + space-to-depth (one 1x relayout of the input; no im2col) ----
    x_img = x.reshape(B, H, W, C)
    xp = jnp.pad(x_img, ((0, 0), (1, 1), (1, 1), (0, 0)))       # (B, H+2, W+2, C)
    xb = xp.reshape(B, Hb, 2, Wb, 2, C)
    xb = jnp.transpose(xb, (0, 1, 3, 2, 4, 5)).reshape(B, Hb, Wb, K4)

    # weight (O, C, 4, 4) -> 4 phase matrices Wg[q=(2*dr+dc)] of shape (4C, Opad)
    wt = jnp.transpose(weight, (2, 3, 1, 0))                    # (kh, kw, C, O)
    wt = wt.reshape(2, 2, 2, 2, C, O)                           # (dr, dh, dc, dw, C, O)
    wt = jnp.transpose(wt, (0, 2, 1, 3, 4, 5))                  # (dr, dc, dh, dw, C, O)
    wq = wt.reshape(4, K4, O).astype(dt)
    wq = jnp.pad(wq, ((0, 0), (0, 0), (0, Opad - O)))
    bq = jnp.pad(bias.astype(jnp.float32), (0, Opad - O)).reshape(1, Opad)

    th = _choose_band_rows(B, Ho, Wo, Wb, K4, Opad, itemsize)
    nb = Ho // th
    vmem_limit = int(min(48 * 1024 * 1024,
                         max(16 * 1024 * 1024,
                             2 * _vmem_footprint_bytes(th, Wb, K4, Wo, Opad,
                                                       itemsize))))

    out = pl.pallas_call(
        _downsample_band_kernel,
        out_shape=jax.ShapeDtypeStruct((B, Ho, Wo, Opad), dt),
        grid_spec=pltpu.PrefetchScalarGridSpec(
            num_scalar_prefetch=0,
            grid=(B, nb),
            in_specs=[
                # main band: rows [i*th, i*th+th) of the space-to-depth image
                pl.BlockSpec((1, th, Wb, K4), lambda b, i: (b, i, 0, 0)),
                # halo: single row i*th+th (block size 1 => block idx == row)
                pl.BlockSpec((1, 1, Wb, K4),
                             lambda b, i: (b, i * th + th, 0, 0)),
                # loop-invariant weights / bias (constant index map => resident)
                pl.BlockSpec((4, K4, Opad), lambda b, i: (0, 0, 0)),
                pl.BlockSpec((1, Opad), lambda b, i: (0, 0)),
            ],
            out_specs=pl.BlockSpec((1, th, Wo, Opad),
                                   lambda b, i: (b, i, 0, 0)),
            scratch_shapes=[pltpu.VMEM((th + 1, Wb, K4), dt)],
        ),
        compiler_params=pltpu.CompilerParams(
            dimension_semantics=("parallel", "parallel"),
            vmem_limit_bytes=vmem_limit),
    )(xb, xb, wq, bq)

    # drop the lane padding, flatten spatial (row-major over Ho, Wo)
    return out[..., :O].reshape(B, Ho * Wo, O)


def _reference_forward(x, weight, bias):
    """Pure-JAX reference using lax conv (NCHW, like PyTorch)."""
    B, L, C = x.shape
    H = W = int(math.isqrt(L))
    x_nchw = jnp.transpose(x, (0, 2, 1)).reshape(B, C, H, W)
    out = jax.lax.conv_general_dilated(
        x_nchw, weight, window_strides=(2, 2), padding=((1, 1), (1, 1)),
        dimension_numbers=("NCHW", "OIHW", "NCHW"))
    out = out + bias.reshape(1, -1, 1, 1)
    Bo, O, Ho, Wo = out.shape
    return jnp.transpose(out.reshape(Bo, O, Ho * Wo), (0, 2, 1))


if __name__ == "__main__":
    # Small shapes consistent with the module: B=2, L=16*16=256, in_ch=4, out_ch=8
    B, H, W = 2, 16, 16
    in_channel, out_channel = 4, 8
    L = H * W

    key = jax.random.PRNGKey(0)
    kx, kw, kb = jax.random.split(key, 3)

    x = jax.random.normal(kx, (B, L, in_channel), dtype=jnp.float32)

    # Deterministic PyTorch-style init: U(-1/sqrt(fan_in), 1/sqrt(fan_in))
    fan_in = in_channel * 4 * 4
    bound = 1.0 / math.sqrt(fan_in)
    weight = jax.random.uniform(kw, (out_channel, in_channel, 4, 4),
                                dtype=jnp.float32, minval=-bound, maxval=bound)
    bias = jax.random.uniform(kb, (out_channel,), dtype=jnp.float32,
                              minval=-bound, maxval=bound)

    out = downsample_forward(x, weight, bias)
    out = jax.block_until_ready(out)

    ref = _reference_forward(x, weight, bias)
    assert out.shape == (B, (H // 2) * (W // 2), out_channel), out.shape
    assert jnp.allclose(out, ref, atol=1e-5, rtol=1e-5), "mismatch vs reference"

    print("KERNEL_OK")
</pallas_src>

<mosaic_0001>
module attributes {stable_mosaic.version = 11 : i64} {
  func.func @_downsample_band_kernel(%arg0: i32, %arg1: i32, %arg2: memref<1x8x9x16xf32, #tpu.memory_space<vmem>>, %arg3: memref<1x1x9x16xf32, #tpu.memory_space<vmem>>, %arg4: memref<4x16x128xf32, #tpu.memory_space<vmem>>, %arg5: memref<1x128xf32, #tpu.memory_space<vmem>>, %arg6: memref<1x8x8x128xf32, #tpu.memory_space<vmem>>, %arg7: memref<9x9x16xf32, #tpu.memory_space<vmem>>) attributes {dimension_semantics = [#tpu.dimension_semantics<parallel>, #tpu.dimension_semantics<parallel>], iteration_bounds = array<i64: 2, 1>, scalar_prefetch = 0 : i64, scratch_operands = 1 : i64, tpu.core_type = #tpu.core_type<tc>, window_params = [{transform_indices = @transform_0, window_bounds = array<i64: 1, 8, 9, 16>}, {transform_indices = @transform_1, window_bounds = array<i64: 1, 1, 9, 16>}, {pipeline_mode = #tpu.pipeline_mode<synchronous>, transform_indices = @transform_2, window_bounds = array<i64: 4, 16, 128>}, {pipeline_mode = #tpu.pipeline_mode<synchronous>, transform_indices = @transform_3, window_bounds = array<i64: 1, 128>}, {transform_indices = @transform_4, window_bounds = array<i64: 1, 8, 8, 128>}]} {
    %c0 = arith.constant 0 : index
    %c0_0 = arith.constant 0 : index
    %c0_1 = arith.constant 0 : index
    %c0_2 = arith.constant 0 : index
    %0 = vector.load %arg2[%c0, %c0_0, %c0_1, %c0_2] : memref<1x8x9x16xf32, #tpu.memory_space<vmem>>, vector<1x8x9x16xf32>
    %1 = vector.shape_cast %0 : vector<1x8x9x16xf32> to vector<8x9x16xf32>
    %c0_3 = arith.constant 0 : index
    %c0_4 = arith.constant 0 : index
    %c0_5 = arith.constant 0 : index
    %2 = vector.load %arg7[%c0_3, %c0_4, %c0_5] : memref<9x9x16xf32, #tpu.memory_space<vmem>>, vector<8x9x16xf32>
    tpu.vector_store %arg7[%c0_3, %c0_4, %c0_5], %1 {strides = array<i32>} : memref<9x9x16xf32, #tpu.memory_space<vmem>>, vector<8x9x16xf32>,
    %c0_6 = arith.constant 0 : index
    %c0_7 = arith.constant 0 : index
    %c0_8 = arith.constant 0 : index
    %c0_9 = arith.constant 0 : index
    %3 = vector.load %arg3[%c0_6, %c0_7, %c0_8, %c0_9] : memref<1x1x9x16xf32, #tpu.memory_space<vmem>>, vector<1x1x9x16xf32>
    %4 = vector.shape_cast %3 : vector<1x1x9x16xf32> to vector<1x9x16xf32>
    %c8 = arith.constant 8 : index
    %c0_10 = arith.constant 0 : index
    %c0_11 = arith.constant 0 : index
    %5 = vector.load %arg7[%c8, %c0_10, %c0_11] : memref<9x9x16xf32, #tpu.memory_space<vmem>>, vector<1x9x16xf32>
    tpu.vector_store %arg7[%c8, %c0_10, %c0_11], %4 {strides = array<i32>} : memref<9x9x16xf32, #tpu.memory_space<vmem>>, vector<1x9x16xf32>,
    %cst = arith.constant 0.000000e+00 : f32
    %6 = vector.broadcast %cst : f32 to vector<64x128xf32>
    %c0_12 = arith.constant 0 : index
    %c0_13 = arith.constant 0 : index
    %c0_14 = arith.constant 0 : index
    %7 = vector.load %arg7[%c0_12, %c0_13, %c0_14] : memref<9x9x16xf32, #tpu.memory_space<vmem>>, vector<8x8x16xf32>
    %8 = vector.shape_cast %7 : vector<8x8x16xf32> to vector<64x16xf32>
    %c0_15 = arith.constant 0 : index
    %c0_16 = arith.constant 0 : index
    %c0_17 = arith.constant 0 : index
    %9 = vector.load %arg4[%c0_15, %c0_16, %c0_17] : memref<4x16x128xf32, #tpu.memory_space<vmem>>, vector<1x16x128xf32>
    %10 = vector.shape_cast %9 : vector<1x16x128xf32> to vector<16x128xf32>
    %cst_18 = arith.constant dense<0.000000e+00> : vector<64x128xf32>
    %11 = tpu.matmul %8, %10, %cst_18 {dimension_numbers = #tpu.dot_dimension_numbers<[1], [0], [0], [1], [0, 0, 1, 1], [], []>} : vector<64x16xf32>, vector<16x128xf32>, vector<64x128xf32> -> vector<64x128xf32>
    %12 = arith.addf %6, %11 : vector<64x128xf32>
    %c0_19 = arith.constant 0 : index
    %c1 = arith.constant 1 : index
    %c0_20 = arith.constant 0 : index
    %13 = vector.load %arg7[%c0_19, %c1, %c0_20] : memref<9x9x16xf32, #tpu.memory_space<vmem>>, vector<8x8x16xf32>
    %14 = vector.shape_cast %13 : vector<8x8x16xf32> to vector<64x16xf32>
    %c1_21 = arith.constant 1 : index
    %c0_22 = arith.constant 0 : index
    %c0_23 = arith.constant 0 : index
    %15 = vector.load %arg4[%c1_21, %c0_22, %c0_23] : memref<4x16x128xf32, #tpu.memory_space<vmem>>, vector<1x16x128xf32>
    %16 = vector.shape_cast %15 : vector<1x16x128xf32> to vector<16x128xf32>
    %cst_24 = arith.constant dense<0.000000e+00> : vector<64x128xf32>
    %17 = tpu.matmul %14, %16, %cst_24 {dimension_numbers = #tpu.dot_dimension_numbers<[1], [0], [0], [1], [0, 0, 1, 1], [], []>} : vector<64x16xf32>, vector<16x128xf32>, vector<64x128xf32> -> vector<64x128xf32>
    %18 = arith.addf %12, %17 : vector<64x128xf32>
    %c1_25 = arith.constant 1 : index
    %c0_26 = arith.constant 0 : index
    %c0_27 = arith.constant 0 : index
    %19 = vector.load %arg7[%c1_25, %c0_26, %c0_27] : memref<9x9x16xf32, #tpu.memory_space<vmem>>, vector<8x8x16xf32>
    %20 = vector.shape_cast %19 : vector<8x8x16xf32> to vector<64x16xf32>
    %c2 = arith.constant 2 : index
    %c0_28 = arith.constant 0 : index
    %c0_29 = arith.constant 0 : index
    %21 = vector.load %arg4[%c2, %c0_28, %c0_29] : memref<4x16x128xf32, #tpu.memory_space<vmem>>, vector<1x16x128xf32>
    %22 = vector.shape_cast %21 : vector<1x16x128xf32> to vector<16x128xf32>
    %cst_30 = arith.constant dense<0.000000e+00> : vector<64x128xf32>
    %23 = tpu.matmul %20, %22, %cst_30 {dimension_numbers = #tpu.dot_dimension_numbers<[1], [0], [0], [1], [0, 0, 1, 1], [], []>} : vector<64x16xf32>, vector<16x128xf32>, vector<64x128xf32> -> vector<64x128xf32>
    %24 = arith.addf %18, %23 : vector<64x128xf32>
    %c1_31 = arith.constant 1 : index
    %c1_32 = arith.constant 1 : index
    %c0_33 = arith.constant 0 : index
    %25 = vector.load %arg7[%c1_31, %c1_32, %c0_33] : memref<9x9x16xf32, #tpu.memory_space<vmem>>, vector<8x8x16xf32>
    %26 = vector.shape_cast %25 : vector<8x8x16xf32> to vector<64x16xf32>
    %c3 = arith.constant 3 : index
    %c0_34 = arith.constant 0 : index
    %c0_35 = arith.constant 0 : index
    %27 = vector.load %arg4[%c3, %c0_34, %c0_35] : memref<4x16x128xf32, #tpu.memory_space<vmem>>, vector<1x16x128xf32>
    %28 = vector.shape_cast %27 : vector<1x16x128xf32> to vector<16x128xf32>
    %cst_36 = arith.constant dense<0.000000e+00> : vector<64x128xf32>
    %29 = tpu.matmul %26, %28, %cst_36 {dimension_numbers = #tpu.dot_dimension_numbers<[1], [0], [0], [1], [0, 0, 1, 1], [], []>} : vector<64x16xf32>, vector<16x128xf32>, vector<64x128xf32> -> vector<64x128xf32>
    %30 = arith.addf %24, %29 : vector<64x128xf32>
    %c0_37 = arith.constant 0 : index
    %c0_38 = arith.constant 0 : index
    %31 = vector.load %arg5[%c0_37, %c0_38] : memref<1x128xf32, #tpu.memory_space<vmem>>, vector<1x128xf32>
    %32 = vector.broadcast %31 : vector<1x128xf32> to vector<64x128xf32>
    %33 = arith.addf %30, %32 : vector<64x128xf32>
    %34 = vector.shape_cast %33 : vector<64x128xf32> to vector<8x8x128xf32>
    %c0_39 = arith.constant 0 : index
    %c0_40 = arith.constant 0 : index
    %c0_41 = arith.constant 0 : index
    %c0_42 = arith.constant 0 : index
    %35 = vector.load %arg6[%c0_39, %c0_40, %c0_41, %c0_42] : memref<1x8x8x128xf32, #tpu.memory_space<vmem>>, vector<1x8x8x128xf32>
    %36 = vector.shape_cast %35 : vector<1x8x8x128xf32> to vector<8x8x128xf32>
    %37 = vector.shape_cast %34 : vector<8x8x128xf32> to vector<1x8x8x128xf32>
    tpu.vector_store %arg6[%c0_39, %c0_40, %c0_41, %c0_42], %37 {strides = array<i32>} : memref<1x8x8x128xf32, #tpu.memory_space<vmem>>, vector<1x8x8x128xf32>,
    return
  }
  func.func @transform_0(%arg0: i32, %arg1: i32) -> (i32, i32, i32, i32) {
    %c0_i32 = arith.constant 0 : i32
    %c0_i32_0 = arith.constant 0 : i32
    %c0_i32_1 = arith.constant 0 : i32
    return %arg0, %arg1, %c0_i32, %c0_i32_0 : i32, i32, i32, i32
  }
  func.func @transform_1(%arg0: i32, %arg1: i32) -> (i32, i32, i32, i32) {
    %c8_i32 = arith.constant 8 : i32
    %0 = arith.muli %arg1, %c8_i32 : i32
    %c8_i32_0 = arith.constant 8 : i32
    %1 = arith.addi %0, %c8_i32_0 : i32
    %c0_i32 = arith.constant 0 : i32
    %c0_i32_1 = arith.constant 0 : i32
    %c0_i32_2 = arith.constant 0 : i32
    return %arg0, %1, %c0_i32, %c0_i32_1 : i32, i32, i32, i32
  }
  func.func @transform_2(%arg0: i32, %arg1: i32) -> (i32, i32, i32) {
    %c0_i32 = arith.constant 0 : i32
    %c0_i32_0 = arith.constant 0 : i32
    %c0_i32_1 = arith.constant 0 : i32
    %c0_i32_2 = arith.constant 0 : i32
    return %c0_i32, %c0_i32_0, %c0_i32_1 : i32, i32, i32
  }
  func.func @transform_3(%arg0: i32, %arg1: i32) -> (i32, i32) {
    %c0_i32 = arith.constant 0 : i32
    %c0_i32_0 = arith.constant 0 : i32
    %c0_i32_1 = arith.constant 0 : i32
    return %c0_i32, %c0_i32_0 : i32, i32
  }
  func.func @transform_4(%arg0: i32, %arg1: i32) -> (i32, i32, i32, i32) {
    %c0_i32 = arith.constant 0 : i32
    %c0_i32_0 = arith.constant 0 : i32
    %c0_i32_1 = arith.constant 0 : i32
    return %arg0, %arg1, %c0_i32, %c0_i32_0 : i32, i32, i32, i32
  }
}

</mosaic_0001>

<llo_original>
// kernel: tpu_custom_call.1
$region0: #{tpu_custom_call.1}
  #allocation0 [shape = 'u32[]', space=smem, size = 0x4, offset = 0x4, fixed_abs, tag = 'smem constant byte address 0x4 - core index']
  #allocation1 [shape = 'u32[144,128]{1,0:T(1,128)}', space=vmem, size = 0x12000, scoped, tag = 'internal scratch']
  #allocation2 [shape = 'f32[9,9,16]{2,1,0:T(8,128)}', space=vmem, size = 0x12000, scoped, tag = 'scratch operand']
  %s0 = inlined_call_operand.vmem [shape: f32[2,9,9,16], index: 0, kind: input, shape index: {}]
  %s1 = inlined_call_operand.vmem [shape: f32[2,9,9,16], index: 1, kind: input, shape index: {}]
  %s2 = inlined_call_operand.vmem [shape: f32[4,16,128], index: 2, kind: input, shape index: {}]
  %s3 = inlined_call_operand.vmem [shape: f32[1,128], index: 3, kind: input, shape index: {}]
  %s4 = inlined_call_operand.hbm [shape: f32[2,8,8,128], index: 4, kind: output, shape index: {}]
  %s5 = sld [smem:[#allocation0]]
  $region49: #{tpu_custom_call.1} parent=0
    _
  %s7 = ssub.s32 1, %s5
  %s8 = scalar_select 0, %s7, %s5
  $region1: #{tpu_custom_call.1} parent=0
    #allocation3 [shape = 'u8[65536]{0}', space=vmem, size = 0x10000, scoped, tag = 'output window, operand 0']
    #allocation4 [shape = 's32[2]{0}', space=sflag, size = 0x8, scoped, tag = 'scoped memory for tpu_custom_call.1']
    %9 = vsyncpa [#allocation4], 0
    %s10 = scalar_lea.sflag [#allocation4], 1
    %11 = vsyncpa %s10, 0
    loop: start=0, step=1, limit=4
    $region2: #{tpu_custom_call.1} parent=1 // loop_pre_header
      _
    $region3: #{tpu_custom_call.1} parent=1 // loop_header
      %s13 = sphi 0, %s17
      %p14 = scmp.ge.s32.totalorder %s13, 4
      %s20 = sphi 0, %s32
      %s21 = sphi 0, %s28
      %s22 = sphi 0, %s20
      %s23 = sphi 0, %s21
      %s24 = sphi 0, %s22
      %s25 = sphi 0, %s23
      %s37 = sphi 0, %s39
      %s40 = sphi 0, %s37
      %s41 = sphi 0, %s40
      %s57 = sphi 0, %s41
      %s69 = sphi 0, %s71
      %s72 = sphi 0, %s69
      %s73 = sphi 0, %s72
      %s89 = sphi 0, %s73
      %s93 = sphi 0, %s93
      %s95 = sphi 0, %s93
      %s96 = sphi 0, %s95
      %s110 = sphi 0, %s96
      %s114 = sphi 0, %s114
      %s116 = sphi 0, %s114
      %s117 = sphi 0, %s116
      %s131 = sphi 0, %s117
      %s139 = sphi 0, %s141
      %s142 = sphi 0, %s139
      %s143 = sphi 0, %s142
      %s159 = sphi 0, %s143
    $region4: #{tpu_custom_call.1} parent=1 // loop_header_branch
      %16 = sbr.rel (%p14) target = $region8
    $region5: #{tpu_custom_call.1} parent=1 // loop_body
      %s18 = ssub.s32 %s13, 1
      %s19 = ssub.s32 %s13, 2
      %s26 = sadd.s32 1, %s21
      %p27 = scmp.ge.s32.totalorder %s26, 1
      %s28 = scalar_select %p27, 0, %s26
      %s29 = sadd.s32 1, %s20
      %s30 = scalar_select %p27, %s29, %s20
      %p31 = scmp.ge.s32.totalorder %s30, 2
      %s32 = scalar_select %p31, 0, %s30
      %s33 = ssub.s32 %s20, %s32
      %s34 = ssub.s32 %s21, %s28
      %s35 = sor.u32 %s33, %s34
      %p36 = scmp.eq.s32.totalorder %s35, 0
      %s38 = sadd.s32 %s37, 1
      %s39 = scalar_select %p36, %s37, %s38
      %p42 = pneg %p36
      %p43 = scmp.eq.s32.totalorder %s13, 1
      %p44 = por %p42, %p43
      %p45 = scmp.ne.s32.totalorder %s37, %s40
      %p46 = scmp.eq.s32.totalorder %s13, 0
      %p47 = por %p45, %p46
      %p48 = scmp.ne.s32.totalorder %s37, %s40
      %p49 = scmp.eq.s32.totalorder %s18, 1
      %p50 = por %p48, %p49
      %p51 = scmp.ne.s32.totalorder %s40, %s41
      %p52 = scmp.eq.s32.totalorder %s18, 0
      %p53 = por %p51, %p52
      %p54 = scmp.ne.s32.totalorder %s40, %s41
      %p55 = scmp.eq.s32.totalorder %s19, 1
      %p56 = por %p54, %p55
      %p58 = scmp.ne.s32.totalorder %s41, %s57
      %p59 = scmp.eq.s32.totalorder %s19, 0
      %p60 = por %p58, %p59
      %s61 = smul.u32 %s21, 8
      %s62 = sadd.s32 %s61, 8
      %s63 = smul.u32 %s28, 8
      %s64 = sadd.s32 %s63, 8
      %s65 = ssub.s32 %s20, %s32
      %s66 = ssub.s32 %s62, %s64
      %s67 = sor.u32 %s65, %s66
      %p68 = scmp.eq.s32.totalorder %s67, 0
      %s70 = sadd.s32 %s69, 1
      %s71 = scalar_select %p68, %s69, %s70
      %p74 = pneg %p68
      %p75 = scmp.eq.s32.totalorder %s13, 1
      %p76 = por %p74, %p75
      %p77 = scmp.ne.s32.totalorder %s69, %s72
      %p78 = scmp.eq.s32.totalorder %s13, 0
      %p79 = por %p77, %p78
      %p80 = scmp.ne.s32.totalorder %s69, %s72
      %p81 = scmp.eq.s32.totalorder %s18, 1
      %p82 = por %p80, %p81
      %p83 = scmp.ne.s32.totalorder %s72, %s73
      %p84 = scmp.eq.s32.totalorder %s18, 0
      %p85 = por %p83, %p84
      %p86 = scmp.ne.s32.totalorder %s72, %s73
      %p87 = scmp.eq.s32.totalorder %s19, 1
      %p88 = por %p86, %p87
      %p90 = scmp.ne.s32.totalorder %s73, %s89
      %p91 = scmp.eq.s32.totalorder %s19, 0
      %p92 = por %p90, %p91
      %s94 = sadd.s32 %s93, 1
      %p97 = scmp.eq.s32.totalorder %s13, 1
      %p98 = scmp.ne.s32.totalorder %s93, %s95
      %p99 = scmp.eq.s32.totalorder %s13, 0
      %p100 = por %p98, %p99
      %p101 = scmp.ne.s32.totalorder %s93, %s95
      %p102 = scmp.eq.s32.totalorder %s18, 1
      %p103 = por %p101, %p102
      %p104 = scmp.ne.s32.totalorder %s95, %s96
      %p105 = scmp.eq.s32.totalorder %s18, 0
      %p106 = por %p104, %p105
      %p107 = scmp.ne.s32.totalorder %s95, %s96
      %p108 = scmp.eq.s32.totalorder %s19, 1
      %p109 = por %p107, %p108
      %p111 = scmp.ne.s32.totalorder %s96, %s110
      %p112 = scmp.eq.s32.totalorder %s19, 0
      %p113 = por %p111, %p112
      %s115 = sadd.s32 %s114, 1
      %p118 = scmp.eq.s32.totalorder %s13, 1
      %p119 = scmp.ne.s32.totalorder %s114, %s116
      %p120 = scmp.eq.s32.totalorder %s13, 0
      %p121 = por %p119, %p120
      %p122 = scmp.ne.s32.totalorder %s114, %s116
      %p123 = scmp.eq.s32.totalorder %s18, 1
      %p124 = por %p122, %p123
      %p125 = scmp.ne.s32.totalorder %s116, %s117
      %p126 = scmp.eq.s32.totalorder %s18, 0
      %p127 = por %p125, %p126
      %p128 = scmp.ne.s32.totalorder %s116, %s117
      %p129 = scmp.eq.s32.totalorder %s19, 1
      %p130 = por %p128, %p129
      %p132 = scmp.ne.s32.totalorder %s117, %s131
      %p133 = scmp.eq.s32.totalorder %s19, 0
      %p134 = por %p132, %p133
      %s135 = ssub.s32 %s20, %s32
      %s136 = ssub.s32 %s21, %s28
      %s137 = sor.u32 %s135, %s136
      %p138 = scmp.eq.s32.totalorder %s137, 0
      %s140 = sadd.s32 %s139, 1
      %s141 = scalar_select %p138, %s139, %s140
      %p144 = pneg %p138
      %p145 = scmp.eq.s32.totalorder %s13, 1
      %p146 = por %p144, %p145
      %p147 = scmp.ne.s32.totalorder %s139, %s142
      %p148 = scmp.eq.s32.totalorder %s13, 0
      %p149 = por %p147, %p148
      %p150 = scmp.ne.s32.totalorder %s139, %s142
      %p151 = scmp.eq.s32.totalorder %s18, 1
      %p152 = por %p150, %p151
      %p153 = scmp.ne.s32.totalorder %s142, %s143
      %p154 = scmp.eq.s32.totalorder %s18, 0
      %p155 = por %p153, %p154
      %p156 = scmp.ne.s32.totalorder %s142, %s143
      %p157 = scmp.eq.s32.totalorder %s19, 1
      %p158 = por %p156, %p157
      %p160 = scmp.ne.s32.totalorder %s143, %s159
      %p161 = scmp.eq.s32.totalorder %s19, 0
      %p162 = por %p160, %p161
      %p163 = scmp.le.s32.totalorder 1, %s13
      %p164 = scmp.lt.s32.totalorder %s13, 3
      %p165 = pnand %p163, %p164
      %p166 = pneg %p165
      // Predicated region
      $region9: #{tpu_custom_call.1} parent=5 // pred_check
        _
      $region10: #{tpu_custom_call.1} parent=5 // pred_check_branch
        %168 = sbr.rel (%p165) target = $region12
      $region11: #{tpu_custom_call.1} parent=5 // pred_region
        %s169 = ssub.s32 %s13, 1
        // Predicated region
        $region13: #{tpu_custom_call.1} parent=11 // pred_check
          %p170 = pneg %p106
        $region14: #{tpu_custom_call.1} parent=11 // pred_check_branch
          %172 = sbr.rel (%p170) target = $region16
        $region15: #{tpu_custom_call.1} parent=11 // pred_region
          _
        $region16: #{tpu_custom_call.1} parent=11 // pred_fallthru
          _
        // Predicated region
        $region17: #{tpu_custom_call.1} parent=11 // pred_check
          %p173 = pneg %p127
        $region18: #{tpu_custom_call.1} parent=11 // pred_check_branch
          %175 = sbr.rel (%p173) target = $region20
        $region19: #{tpu_custom_call.1} parent=11 // pred_region
          _
        $region20: #{tpu_custom_call.1} parent=11 // pred_fallthru
          _
      $region12: #{tpu_custom_call.1} parent=5 // pred_fallthru
        _
      %p176 = scmp.lt.s32.totalorder %s13, 2
      // Predicated region
      $region21: #{tpu_custom_call.1} parent=5 // pred_check
        %p177 = pneg %p176
      $region22: #{tpu_custom_call.1} parent=5 // pred_check_branch
        %179 = sbr.rel (%p177) target = $region24
      $region23: #{tpu_custom_call.1} parent=5 // pred_region
        // Predicated region
        $region25: #{tpu_custom_call.1} parent=23 // pred_check
          %p180 = pneg %p47
        $region26: #{tpu_custom_call.1} parent=23 // pred_check_branch
          %182 = sbr.rel (%p180) target = $region28
        $region27: #{tpu_custom_call.1} parent=23 // pred_region
          %s183 = smul.u32 8, %s21
          %s184 = ssub.s32 9, %s183
          %p185 = scmp.lt.s32.totalorder %s184, 8
          %s186 = scalar_select %p185, %s184, 8
          %s187 = smul.u32 128, %s186
          %s188 = smul.u32 %s187, 2
          %p189 = scmp.lt.s32.totalorder %s20, 1
          %s190 = scalar_select %p189, %s20, 1
          %p191 = scmp.lt.s32.totalorder %s183, 8
          %s192 = scalar_select %p191, %s183, 8
          %s193 = smul.addr %s192, 2
          %s194 = smul.addr %s190, 18
          %s195 = sadd.s32 %s193, %s194
          %s196 = smul.addr %s195, 8
          %s197 = scalar_lea.vmem %s0, %s196
          %s198 = smul.u32 8, %s21
          %s199 = ssub.s32 9, %s198
          %p200 = scmp.lt.s32.totalorder %s199, 8
          %s201 = scalar_select %p200, %s199, 8
          %s202 = smul.u32 128, %s201
          %s203 = smul.u32 %s202, 2
        $region28: #{tpu_custom_call.1} parent=23 // pred_fallthru
          _
        // Predicated region
        $region29: #{tpu_custom_call.1} parent=23 // pred_check
          %p204 = pneg %p79
        $region30: #{tpu_custom_call.1} parent=23 // pred_check_branch
          %206 = sbr.rel (%p204) target = $region32
        $region31: #{tpu_custom_call.1} parent=23 // pred_region
          %s207 = smul.u32 %s21, 8
          %s208 = sadd.s32 %s207, 8
          %p209 = scmp.lt.s32.totalorder %s20, 1
          %s210 = scalar_select %p209, %s20, 1
          %p211 = scmp.lt.s32.totalorder %s208, 8
          %s212 = scalar_select %p211, %s208, 8
          %s213 = smul.addr %s212, 2
          %s214 = smul.addr %s210, 18
          %s215 = sadd.s32 %s213, %s214
          %s216 = smul.addr %s215, 8
          %s217 = scalar_lea.vmem %s1, %s216
          %s218 = smul.u32 %s21, 8
          %s219 = sadd.s32 %s218, 8
        $region32: #{tpu_custom_call.1} parent=23 // pred_fallthru
          _
      $region24: #{tpu_custom_call.1} parent=5 // pred_fallthru
        _
      %p220 = scmp.le.s32.totalorder 1, %s13
      %p221 = scmp.lt.s32.totalorder %s13, 3
      %p222 = pnand %p220, %p221
      %p223 = pneg %p222
      // Predicated region
      $region33: #{tpu_custom_call.1} parent=5 // pred_check
        _
      $region34: #{tpu_custom_call.1} parent=5 // pred_check_branch
        %225 = sbr.rel (%p222) target = $region36
      $region35: #{tpu_custom_call.1} parent=5 // pred_region
        %s226 = ssub.s32 %s13, 1
        %s227 = smul.u32 8, %s23
        %s228 = ssub.s32 9, %s227
        %p229 = scmp.lt.s32.totalorder %s228, 8
        %s230 = scalar_select %p229, %s228, 8
        %s231 = smul.u32 128, %s230
        %s232 = smul.u32 %s231, 2
        %p233 = scmp.lt.s32.totalorder %s22, 1
        %s234 = scalar_select %p233, %s22, 1
        %p235 = scmp.lt.s32.totalorder %s227, 8
        %s236 = scalar_select %p235, %s227, 8
        %s237 = smul.addr %s236, 2
        %s238 = smul.addr %s234, 18
        %s239 = sadd.s32 %s237, %s238
        %s240 = smul.addr %s239, 8
        %s241 = scalar_lea.vmem %s0, %s240
        %p242 = pneg %p53
        %p243 = pneg %p50
        %s244 = smul.u32 %s23, 8
        %s245 = sadd.s32 %s244, 8
        %p246 = scmp.lt.s32.totalorder %s22, 1
        %s247 = scalar_select %p246, %s22, 1
        %p248 = scmp.lt.s32.totalorder %s245, 8
        %s249 = scalar_select %p248, %s245, 8
        %s250 = smul.addr %s249, 2
        %s251 = smul.addr %s247, 18
        %s252 = sadd.s32 %s250, %s251
        %s253 = smul.addr %s252, 8
        %s254 = scalar_lea.vmem %s1, %s253
        %p255 = pneg %p85
        %p256 = pneg %p82
        %p257 = pneg %p106
        %p258 = pneg %p103
        %p259 = pneg %p127
        %p260 = pneg %p124
        %p261 = pneg %p155
        %p262 = pneg %p152
        %s263 = sand.u32 %s142, 1
        %s264 = scalar_lea.sflag [#allocation4], %s263
        %s265 = sand.u32 %s142, 1
        %s266 = smul.addr %s265, 64
        %s267 = scalar_lea.vmem [#allocation3], %s266
        %s268 = smul.u32 8, %s23
        %s269 = ssub.s32 9, %s268
        %p270 = scmp.lt.s32.totalorder %s269, 8
        %s271 = scalar_select %p270, %s269, 8
        %s272 = smul.u32 128, %s271
        %s273 = smul.u32 %s272, 2
        %p274 = scmp.lt.s32.totalorder %s22, 1
        %s275 = scalar_select %p274, %s22, 1
        %p276 = scmp.lt.s32.totalorder %s268, 8
        %s277 = scalar_select %p276, %s268, 8
        %s278 = smul.addr %s277, 2
        %s279 = smul.addr %s275, 18
        %s280 = sadd.s32 %s278, %s279
        %s281 = smul.addr %s280, 8
        %s282 = scalar_lea.vmem %s0, %s281
        %s283 = smul.u32 8, %s23
        %s284 = ssub.s32 9, %s283
        %p285 = scmp.lt.s32.totalorder %s284, 8
        %s286 = scalar_select %p285, %s284, 8
        %s287 = smul.u32 128, %s286
        %s288 = smul.u32 %s287, 2
        %s289 = smul.u32 %s23, 8
        %s290 = sadd.s32 %s289, 8
        %p291 = scmp.lt.s32.totalorder %s22, 1
        %s292 = scalar_select %p291, %s22, 1
        %p293 = scmp.lt.s32.totalorder %s290, 8
        %s294 = scalar_select %p293, %s290, 8
        %s295 = smul.addr %s294, 2
        %s296 = smul.addr %s292, 18
        %s297 = sadd.s32 %s295, %s296
        %s298 = smul.addr %s297, 8
        %s299 = scalar_lea.vmem %s1, %s298
        %s300 = smul.u32 %s23, 8
        %s301 = sadd.s32 %s300, 8
        %s302 = smul.u32 8, %s23
        %v303 = vld [vmem:[%s282] sm:$0xff]
        %v304 = vld [vmem:[%s282 + $0x8] sm:$0x1]
        %v305 = vld [vmem:[%s282 + $0x10] sm:$0xff]
        %v306 = vld [vmem:[%s282 + $0x18] sm:$0x1]
        %v307 = vld [vmem:[%s282 + $0x20] sm:$0xff]
        %v308 = vld [vmem:[%s282 + $0x28] sm:$0x1]
        %v309 = vld [vmem:[%s282 + $0x30] sm:$0xff]
        %v310 = vld [vmem:[%s282 + $0x38] sm:$0x1]
        %v311 = vld [vmem:[%s282 + $0x40] sm:$0xff]
        %v312 = vld [vmem:[%s282 + $0x48] sm:$0x1]
        %v313 = vld [vmem:[%s282 + $0x50] sm:$0xff]
        %v314 = vld [vmem:[%s282 + $0x58] sm:$0x1]
        %v315 = vld [vmem:[%s282 + $0x60] sm:$0xff]
        %v316 = vld [vmem:[%s282 + $0x68] sm:$0x1]
        %v317 = vld [vmem:[%s282 + $0x70] sm:$0xff]
        %v318 = vld [vmem:[%s282 + $0x78] sm:$0x1]
        %vm319 = vcmask 130048
        %320 = vst.msk [vmem:[#allocation2] sm:$0xff] %vm319, %v303
        %vm321 = vcmask 122880
        %322 = vst.msk [vmem:[#allocation2 + $0x8] sm:$0x1] %vm321, %v304
        %323 = vst.msk [vmem:[#allocation2 + $0x10] sm:$0xff] %vm319, %v305
        %324 = vst.msk [vmem:[#allocation2 + $0x18] sm:$0x1] %vm321, %v306
        %325 = vst.msk [vmem:[#allocation2 + $0x20] sm:$0xff] %vm319, %v307
        %326 = vst.msk [vmem:[#allocation2 + $0x28] sm:$0x1] %vm321, %v308
        %327 = vst.msk [vmem:[#allocation2 + $0x30] sm:$0xff] %vm319, %v309
        %328 = vst.msk [vmem:[#allocation2 + $0x38] sm:$0x1] %vm321, %v310
        %329 = vst.msk [vmem:[#allocation2 + $0x40] sm:$0xff] %vm319, %v311
        %330 = vst.msk [vmem:[#allocation2 + $0x48] sm:$0x1] %vm321, %v312
        %331 = vst.msk [vmem:[#allocation2 + $0x50] sm:$0xff] %vm319, %v313
        %332 = vst.msk [vmem:[#allocation2 + $0x58] sm:$0x1] %vm321, %v314
        %333 = vst.msk [vmem:[#allocation2 + $0x60] sm:$0xff] %vm319, %v315
        %334 = vst.msk [vmem:[#allocation2 + $0x68] sm:$0x1] %vm321, %v316
        %335 = vst.msk [vmem:[#allocation2 + $0x70] sm:$0xff] %vm319, %v317
        %336 = vst.msk [vmem:[#allocation2 + $0x78] sm:$0x1] %vm321, %v318
        %v337 = vld [vmem:[%s299] sm:$0xff]
        %v338 = vld [vmem:[%s299 + $0x8] sm:$0x1]
        %s339 = scalar_lea.vmem [#allocation2], 128
        %340 = vst.msk [vmem:[%s339] sm:$0xff] %vm319, %v337
        %341 = vst.msk [vmem:[%s339 + $0x8] sm:$0x1] %vm321, %v338
        %v342 = vld [vmem:[#allocation2] sm:$0xff]
        %v343 = vld [vmem:[#allocation2 + $0x10] sm:$0xff]
        %v344 = vld [vmem:[#allocation2 + $0x20] sm:$0xff]
        %v345 = vld [vmem:[#allocation2 + $0x30] sm:$0xff]
        %v346 = vld [vmem:[#allocation2 + $0x40] sm:$0xff]
        %v347 = vld [vmem:[#allocation2 + $0x50] sm:$0xff]
        %v348 = vld [vmem:[#allocation2 + $0x60] sm:$0xff]
        %v349 = vld [vmem:[#allocation2 + $0x70] sm:$0xff]
        %v350 = vld [vmem:[%s2] sm:$0xff]
        %v351 = vld [vmem:[%s2 + $0x8] sm:$0xff]
        %v352 = vld [vmem:[#allocation2 + $0x1] sm:$0xff]
        %v353 = vld [vmem:[#allocation2 + $0x11] sm:$0xff]
        %v354 = vld [vmem:[#allocation2 + $0x21] sm:$0xff]
        %v355 = vld [vmem:[#allocation2 + $0x31] sm:$0xff]
        %v356 = vld [vmem:[#allocation2 + $0x41] sm:$0xff]
        %v357 = vld [vmem:[#allocation2 + $0x51] sm:$0xff]
        %v358 = vld [vmem:[#allocation2 + $0x61] sm:$0xff]
        %v359 = vld [vmem:[#allocation2 + $0x71] sm:$0xff]
        %s360 = scalar_lea.vmem %s2, 16
        %v361 = vld [vmem:[%s360] sm:$0xff]
        %v362 = vld [vmem:[%s360 + $0x8] sm:$0xff]
        %v364 = vsel %vm319, %v352, 0
        %v367 = vsel %vm319, %v353, 0
        %v370 = vsel %vm319, %v354, 0
        %v373 = vsel %vm319, %v355, 0
        %v376 = vsel %vm319, %v356, 0
        %v379 = vsel %vm319, %v357, 0
        %v382 = vsel %vm319, %v358, 0
        %v385 = vsel %vm319, %v359, 0
        %387 = vmatprep.subr.mxu0 0.0
        %388 = vmatpush1.msra.mxu0 %v361
        %389 = vmatprep.subr.mxu0 0.0
        %390 = vmatpush1.msra.mxu0 %v362
        %391 = vmatprep.subr.mxu0 0.0
        %392 = vmatpush1.msra.mxu0 0.0
        %393 = vmatprep.subr.mxu0 0.0
        %394 = vmatpush1.msra.mxu0 0.0
        %395 = vmatprep.subr.mxu0 0.0
        %396 = vmatpush1.msra.mxu0 0.0
        %397 = vmatprep.subr.mxu0 0.0
        %398 = vmatpush1.msra.mxu0 0.0
        %399 = vmatprep.subr.mxu0 0.0
        %400 = vmatpush1.msra.mxu0 0.0
        %401 = vmatprep.subr.mxu0 0.0
        %402 = vmatpush1.msra.mxu0 0.0
        %403 = vmatprep.subr.mxu0 0.0
        %404 = vmatpush1.msra.mxu0 0.0
        %405 = vmatprep.subr.mxu0 0.0
        %406 = vmatpush1.msra.mxu0 0.0
        %407 = vmatprep.subr.mxu0 0.0
        %408 = vmatpush1.msra.mxu0 0.0
        %409 = vmatprep.subr.mxu0 0.0
        %410 = vmatpush1.msra.mxu0 0.0
        %411 = vmatprep.subr.mxu0 0.0
        %412 = vmatpush1.msra.mxu0 0.0
        %413 = vmatprep.subr.mxu0 0.0
        %414 = vmatpush1.msra.mxu0 0.0
        %415 = vmatprep.subr.mxu0 0.0
        %416 = vmatpush1.msra.mxu0 0.0
        %417 = vmatprep.subr.mxu0 0.0
        %418 = vmatpush1.msra.mxu0 0.0
        %419 = vmatprep.subr.mxu0 0.0
        %420 = vmatpush1.msra.mxu0 0.0
        %421 = vmatprep.subr.mxu0 0.0
        %422 = vmatpush1.msra.mxu0 0.0
        %423 = vmatprep.subr.mxu0 0.0
        %424 = vmatpush1.msra.mxu0 0.0
        %425 = vmatprep.subr.mxu0 0.0
        %426 = vmatpush1.msra.mxu0 0.0
        %427 = vmatprep.subr.mxu0 0.0
        %428 = vmatpush1.msra.mxu0 0.0
        %429 = vmatprep.subr.mxu0 0.0
        %430 = vmatpush1.msra.mxu0 0.0
        %431 = vmatprep.subr.mxu0 0.0
        %432 = vmatpush1.msra.mxu0 0.0
        %433 = vmatprep.subr.mxu0 0.0
        %434 = vmatpush1.msra.mxu0 0.0
        %435 = vmatprep.subr.mxu0 0.0
        %436 = vmatpush1.msra.mxu0 0.0
        %437 = vmatprep.subr.mxu0 0.0
        %438 = vmatpush1.msra.mxu0 0.0
        %439 = vmatprep.subr.mxu0 0.0
        %440 = vmatpush1.msra.mxu0 0.0
        %441 = vmatprep.subr.mxu0 0.0
        %442 = vmatpush1.msra.mxu0 0.0
        %443 = vmatprep.subr.mxu0 0.0
        %444 = vmatpush1.msra.mxu0 0.0
        %445 = vmatprep.subr.mxu0 0.0
        %446 = vmatpush1.msra.mxu0 0.0
        %447 = vmatprep.subr.mxu0 0.0
        %448 = vmatpush1.msra.mxu0 0.0
        %449 = vmatprep.subr.mxu0 0.0
        %450 = vmatpush1.msra.mxu0 0.0
        %451 = vmatprep.mubr.f32.mxu0 0.0
        %452 = vmatmul.mubr.f32.gmra.mrb[0].mxu0 %v364
        %v453 = vpop.f32.mrb[0].mxu0
        %v454 = vadd.f32 0.0, %v453
        %v455 = vpop.f32.mrb[0].mxu0
        %456 = vmatprep.mubr.f32.mxu0 0.0
        %457 = vmatmul.mubr.f32.gmra.mrb[0].mxu0 %v367
        %v458 = vpop.f32.mrb[0].mxu0
        %v459 = vadd.f32 0.0, %v458
        %v460 = vpop.f32.mrb[0].mxu0
        %461 = vmatprep.mubr.f32.mxu0 0.0
        %462 = vmatmul.mubr.f32.gmra.mrb[0].mxu0 %v370
        %v463 = vpop.f32.mrb[0].mxu0
        %v464 = vadd.f32 0.0, %v463
        %v465 = vpop.f32.mrb[0].mxu0
        %466 = vmatprep.mubr.f32.mxu0 0.0
        %467 = vmatmul.mubr.f32.gmra.mrb[0].mxu0 %v373
        %v468 = vpop.f32.mrb[0].mxu0
        %v469 = vadd.f32 0.0, %v468
        %v470 = vpop.f32.mrb[0].mxu0
        %471 = vmatprep.mubr.f32.mxu0 0.0
        %472 = vmatmul.mubr.f32.gmra.mrb[0].mxu0 %v376
        %v473 = vpop.f32.mrb[0].mxu0
        %v474 = vadd.f32 0.0, %v473
        %v475 = vpop.f32.mrb[0].mxu0
        %476 = vmatprep.mubr.f32.mxu0 0.0
        %477 = vmatmul.mubr.f32.gmra.mrb[0].mxu0 %v379
        %v478 = vpop.f32.mrb[0].mxu0
        %v479 = vadd.f32 0.0, %v478
        %v480 = vpop.f32.mrb[0].mxu0
        %481 = vmatprep.mubr.f32.mxu0 0.0
        %482 = vmatmul.mubr.f32.gmra.mrb[0].mxu0 %v382
        %v483 = vpop.f32.mrb[0].mxu0
        %v484 = vadd.f32 0.0, %v483
        %v485 = vpop.f32.mrb[0].mxu0
        %486 = vmatprep.mubr.f32.mxu0 0.0
        %487 = vmatmul.mubr.f32.gmra.mrb[0].mxu0 %v385
        %v488 = vpop.f32.mrb[0].mxu0
        %v489 = vadd.f32 0.0, %v488
        %v490 = vpop.f32.mrb[0].mxu0
        %491 = vdwg.mxu0
        %v493 = vsel %vm319, %v342, 0
        %v496 = vsel %vm319, %v343, 0
        %v499 = vsel %vm319, %v344, 0
        %v502 = vsel %vm319, %v345, 0
        %v505 = vsel %vm319, %v346, 0
        %v508 = vsel %vm319, %v347, 0
        %v511 = vsel %vm319, %v348, 0
        %v514 = vsel %vm319, %v349, 0
        %516 = vmatprep.subr.mxu0 0.0
        %517 = vmatpush1.msra.mxu0 %v350
        %518 = vmatprep.subr.mxu0 0.0
        %519 = vmatpush1.msra.mxu0 %v351
        %520 = vmatprep.subr.mxu0 0.0
        %521 = vmatpush1.msra.mxu0 0.0
        %522 = vmatprep.subr.mxu0 0.0
        %523 = vmatpush1.msra.mxu0 0.0
        %524 = vmatprep.subr.mxu0 0.0
        %525 = vmatpush1.msra.mxu0 0.0
        %526 = vmatprep.subr.mxu0 0.0
        %527 = vmatpush1.msra.mxu0 0.0
        %528 = vmatprep.subr.mxu0 0.0
        %529 = vmatpush1.msra.mxu0 0.0
        %530 = vmatprep.subr.mxu0 0.0
        %531 = vmatpush1.msra.mxu0 0.0
        %532 = vmatprep.subr.mxu0 0.0
        %533 = vmatpush1.msra.mxu0 0.0
        %534 = vmatprep.subr.mxu0 0.0
        %535 = vmatpush1.msra.mxu0 0.0
        %536 = vmatprep.subr.mxu0 0.0
        %537 = vmatpush1.msra.mxu0 0.0
        %538 = vmatprep.subr.mxu0 0.0
        %539 = vmatpush1.msra.mxu0 0.0
        %540 = vmatprep.subr.mxu0 0.0
        %541 = vmatpush1.msra.mxu0 0.0
        %542 = vmatprep.subr.mxu0 0.0
        %543 = vmatpush1.msra.mxu0 0.0
        %544 = vmatprep.subr.mxu0 0.0
        %545 = vmatpush1.msra.mxu0 0.0
        %546 = vmatprep.subr.mxu0 0.0
        %547 = vmatpush1.msra.mxu0 0.0
        %548 = vmatprep.subr.mxu0 0.0
        %549 = vmatpush1.msra.mxu0 0.0
        %550 = vmatprep.subr.mxu0 0.0
        %551 = vmatpush1.msra.mxu0 0.0
        %552 = vmatprep.subr.mxu0 0.0
        %553 = vmatpush1.msra.mxu0 0.0
        %554 = vmatprep.subr.mxu0 0.0
        %555 = vmatpush1.msra.mxu0 0.0
        %556 = vmatprep.subr.mxu0 0.0
        %557 = vmatpush1.msra.mxu0 0.0
        %558 = vmatprep.subr.mxu0 0.0
        %559 = vmatpush1.msra.mxu0 0.0
        %560 = vmatprep.subr.mxu0 0.0
        %561 = vmatpush1.msra.mxu0 0.0
        %562 = vmatprep.subr.mxu0 0.0
        %563 = vmatpush1.msra.mxu0 0.0
        %564 = vmatprep.subr.mxu0 0.0
        %565 = vmatpush1.msra.mxu0 0.0
        %566 = vmatprep.subr.mxu0 0.0
        %567 = vmatpush1.msra.mxu0 0.0
        %568 = vmatprep.subr.mxu0 0.0
        %569 = vmatpush1.msra.mxu0 0.0
        %570 = vmatprep.subr.mxu0 0.0
        %571 = vmatpush1.msra.mxu0 0.0
        %572 = vmatprep.subr.mxu0 0.0
        %573 = vmatpush1.msra.mxu0 0.0
        %574 = vmatprep.subr.mxu0 0.0
        %575 = vmatpush1.msra.mxu0 0.0
        %576 = vmatprep.subr.mxu0 0.0
        %577 = vmatpush1.msra.mxu0 0.0
        %578 = vmatprep.subr.mxu0 0.0
        %579 = vmatpush1.msra.mxu0 0.0
        %580 = vmatprep.mubr.f32.mxu0 0.0
        %581 = vmatmul.mubr.f32.gmra.mrb[0].mxu0 %v493
        %v582 = vpop.f32.mrb[0].mxu0
        %v583 = vadd.f32 %v454, %v582
        %v584 = vpop.f32.mrb[0].mxu0
        %585 = vmatprep.mubr.f32.mxu0 0.0
        %586 = vmatmul.mubr.f32.gmra.mrb[0].mxu0 %v496
        %v587 = vpop.f32.mrb[0].mxu0
        %v588 = vadd.f32 %v459, %v587
        %v589 = vpop.f32.mrb[0].mxu0
        %590 = vmatprep.mubr.f32.mxu0 0.0
        %591 = vmatmul.mubr.f32.gmra.mrb[0].mxu0 %v499
        %v592 = vpop.f32.mrb[0].mxu0
        %v593 = vadd.f32 %v464, %v592
        %v594 = vpop.f32.mrb[0].mxu0
        %595 = vmatprep.mubr.f32.mxu0 0.0
        %596 = vmatmul.mubr.f32.gmra.mrb[0].mxu0 %v502
        %v597 = vpop.f32.mrb[0].mxu0
        %v598 = vadd.f32 %v469, %v597
        %v599 = vpop.f32.mrb[0].mxu0
        %600 = vmatprep.mubr.f32.mxu0 0.0
        %601 = vmatmul.mubr.f32.gmra.mrb[0].mxu0 %v505
        %v602 = vpop.f32.mrb[0].mxu0
        %v603 = vadd.f32 %v474, %v602
        %v604 = vpop.f32.mrb[0].mxu0
        %605 = vmatprep.mubr.f32.mxu0 0.0
        %606 = vmatmul.mubr.f32.gmra.mrb[0].mxu0 %v508
        %v607 = vpop.f32.mrb[0].mxu0
        %v608 = vadd.f32 %v479, %v607
        %v609 = vpop.f32.mrb[0].mxu0
        %610 = vmatprep.mubr.f32.mxu0 0.0
        %611 = vmatmul.mubr.f32.gmra.mrb[0].mxu0 %v511
        %v612 = vpop.f32.mrb[0].mxu0
        %v613 = vadd.f32 %v484, %v612
        %v614 = vpop.f32.mrb[0].mxu0
        %615 = vmatprep.mubr.f32.mxu0 0.0
        %616 = vmatmul.mubr.f32.gmra.mrb[0].mxu0 %v514
        %v617 = vpop.f32.mrb[0].mxu0
        %v618 = vadd.f32 %v489, %v617
        %v619 = vpop.f32.mrb[0].mxu0
        %620 = vdwg.mxu0
        %s621 = scalar_lea.vmem [#allocation2], 16
        %v622 = vld [vmem:[%s621] sm:$0xff]
        %v623 = vld [vmem:[%s621 + $0x10] sm:$0xff]
        %v624 = vld [vmem:[%s621 + $0x20] sm:$0xff]
        %v625 = vld [vmem:[%s621 + $0x30] sm:$0xff]
        %v626 = vld [vmem:[%s621 + $0x40] sm:$0xff]
        %v627 = vld [vmem:[%s621 + $0x50] sm:$0xff]
        %v628 = vld [vmem:[%s621 + $0x60] sm:$0xff]
        %v629 = vld [vmem:[%s621 + $0x70] sm:$0xff]
        %s630 = scalar_lea.vmem %s2, 32
        %v631 = vld [vmem:[%s630] sm:$0xff]
        %v632 = vld [vmem:[%s630 + $0x8] sm:$0xff]
        %v634 = vsel %vm319, %v622, 0
        %v637 = vsel %vm319, %v623, 0
        %v640 = vsel %vm319, %v624, 0
        %v643 = vsel %vm319, %v625, 0
        %v646 = vsel %vm319, %v626, 0
        %v649 = vsel %vm319, %v627, 0
        %v652 = vsel %vm319, %v628, 0
        %v655 = vsel %vm319, %v629, 0
        %657 = vmatprep.subr.mxu0 0.0
        %658 = vmatpush1.msra.mxu0 %v631
        %659 = vmatprep.subr.mxu0 0.0
        %660 = vmatpush1.msra.mxu0 %v632
        %661 = vmatprep.subr.mxu0 0.0
        %662 = vmatpush1.msra.mxu0 0.0
        %663 = vmatprep.subr.mxu0 0.0
        %664 = vmatpush1.msra.mxu0 0.0
        %665 = vmatprep.subr.mxu0 0.0
        %666 = vmatpush1.msra.mxu0 0.0
        %667 = vmatprep.subr.mxu0 0.0
        %668 = vmatpush1.msra.mxu0 0.0
        %669 = vmatprep.subr.mxu0 0.0
        %670 = vmatpush1.msra.mxu0 0.0
        %671 = vmatprep.subr.mxu0 0.0
        %672 = vmatpush1.msra.mxu0 0.0
        %673 = vmatprep.subr.mxu0 0.0
        %674 = vmatpush1.msra.mxu0 0.0
        %675 = vmatprep.subr.mxu0 0.0
        %676 = vmatpush1.msra.mxu0 0.0
        %677 = vmatprep.subr.mxu0 0.0
        %678 = vmatpush1.msra.mxu0 0.0
        %679 = vmatprep.subr.mxu0 0.0
        %680 = vmatpush1.msra.mxu0 0.0
        %681 = vmatprep.subr.mxu0 0.0
        %682 = vmatpush1.msra.mxu0 0.0
        %683 = vmatprep.subr.mxu0 0.0
        %684 = vmatpush1.msra.mxu0 0.0
        %685 = vmatprep.subr.mxu0 0.0
        %686 = vmatpush1.msra.mxu0 0.0
        %687 = vmatprep.subr.mxu0 0.0
        %688 = vmatpush1.msra.mxu0 0.0
        %689 = vmatprep.subr.mxu0 0.0
        %690 = vmatpush1.msra.mxu0 0.0
        %691 = vmatprep.subr.mxu0 0.0
        %692 = vmatpush1.msra.mxu0 0.0
        %693 = vmatprep.subr.mxu0 0.0
        %694 = vmatpush1.msra.mxu0 0.0
        %695 = vmatprep.subr.mxu0 0.0
        %696 = vmatpush1.msra.mxu0 0.0
        %697 = vmatprep.subr.mxu0 0.0
        %698 = vmatpush1.msra.mxu0 0.0
        %699 = vmatprep.subr.mxu0 0.0
        %700 = vmatpush1.msra.mxu0 0.0
        %701 = vmatprep.subr.mxu0 0.0
        %702 = vmatpush1.msra.mxu0 0.0
        %703 = vmatprep.subr.mxu0 0.0
        %704 = vmatpush1.msra.mxu0 0.0
        %705 = vmatprep.subr.mxu0 0.0
        %706 = vmatpush1.msra.mxu0 0.0
        %707 = vmatprep.subr.mxu0 0.0
        %708 = vmatpush1.msra.mxu0 0.0
        %709 = vmatprep.subr.mxu0 0.0
        %710 = vmatpush1.msra.mxu0 0.0
        %711 = vmatprep.subr.mxu0 0.0
        %712 = vmatpush1.msra.mxu0 0.0
        %713 = vmatprep.subr.mxu0 0.0
        %714 = vmatpush1.msra.mxu0 0.0
        %715 = vmatprep.subr.mxu0 0.0
        %716 = vmatpush1.msra.mxu0 0.0
        %717 = vmatprep.subr.mxu0 0.0
        %718 = vmatpush1.msra.mxu0 0.0
        %719 = vmatprep.subr.mxu0 0.0
        %720 = vmatpush1.msra.mxu0 0.0
        %721 = vmatprep.mubr.f32.mxu0 0.0
        %722 = vmatmul.mubr.f32.gmra.mrb[0].mxu0 %v634
        %v723 = vpop.f32.mrb[0].mxu0
        %v724 = vadd.f32 0.0, %v723
        %v725 = vpop.f32.mrb[0].mxu0
        %726 = vmatprep.mubr.f32.mxu0 0.0
        %727 = vmatmul.mubr.f32.gmra.mrb[0].mxu0 %v637
        %v728 = vpop.f32.mrb[0].mxu0
        %v729 = vadd.f32 0.0, %v728
        %v730 = vpop.f32.mrb[0].mxu0
        %731 = vmatprep.mubr.f32.mxu0 0.0
        %732 = vmatmul.mubr.f32.gmra.mrb[0].mxu0 %v640
        %v733 = vpop.f32.mrb[0].mxu0
        %v734 = vadd.f32 0.0, %v733
        %v735 = vpop.f32.mrb[0].mxu0
        %736 = vmatprep.mubr.f32.mxu0 0.0
        %737 = vmatmul.mubr.f32.gmra.mrb[0].mxu0 %v643
        %v738 = vpop.f32.mrb[0].mxu0
        %v739 = vadd.f32 0.0, %v738
        %v740 = vpop.f32.mrb[0].mxu0
        %741 = vmatprep.mubr.f32.mxu0 0.0
        %742 = vmatmul.mubr.f32.gmra.mrb[0].mxu0 %v646
        %v743 = vpop.f32.mrb[0].mxu0
        %v744 = vadd.f32 0.0, %v743
        %v745 = vpop.f32.mrb[0].mxu0
        %746 = vmatprep.mubr.f32.mxu0 0.0
        %747 = vmatmul.mubr.f32.gmra.mrb[0].mxu0 %v649
        %v748 = vpop.f32.mrb[0].mxu0
        %v749 = vadd.f32 0.0, %v748
        %v750 = vpop.f32.mrb[0].mxu0
        %751 = vmatprep.mubr.f32.mxu0 0.0
        %752 = vmatmul.mubr.f32.gmra.mrb[0].mxu0 %v652
        %v753 = vpop.f32.mrb[0].mxu0
        %v754 = vadd.f32 0.0, %v753
        %v755 = vpop.f32.mrb[0].mxu0
        %756 = vmatprep.mubr.f32.mxu0 0.0
        %757 = vmatmul.mubr.f32.gmra.mrb[0].mxu0 %v655
        %v758 = vpop.f32.mrb[0].mxu0
        %v759 = vadd.f32 0.0, %v758
        %v760 = vpop.f32.mrb[0].mxu0
        %761 = vdwg.mxu0
        %v762 = vadd.f32 %v583, %v724
        %v763 = vadd.f32 %v588, %v729
        %v764 = vadd.f32 %v593, %v734
        %v765 = vadd.f32 %v598, %v739
        %v766 = vadd.f32 %v603, %v744
        %v767 = vadd.f32 %v608, %v749
        %v768 = vadd.f32 %v613, %v754
        %v769 = vadd.f32 %v618, %v759
        %v770 = vld [vmem:[%s621 + $0x1] sm:$0xff]
        %v771 = vld [vmem:[%s621 + $0x11] sm:$0xff]
        %v772 = vld [vmem:[%s621 + $0x21] sm:$0xff]
        %v773 = vld [vmem:[%s621 + $0x31] sm:$0xff]
        %v774 = vld [vmem:[%s621 + $0x41] sm:$0xff]
        %v775 = vld [vmem:[%s621 + $0x51] sm:$0xff]
        %v776 = vld [vmem:[%s621 + $0x61] sm:$0xff]
        %v777 = vld [vmem:[%s621 + $0x71] sm:$0xff]
        %s778 = scalar_lea.vmem %s2, 48
        %v779 = vld [vmem:[%s778] sm:$0xff]
        %v780 = vld [vmem:[%s778 + $0x8] sm:$0xff]
        %v782 = vsel %vm319, %v770, 0
        %v785 = vsel %vm319, %v771, 0
        %v788 = vsel %vm319, %v772, 0
        %v791 = vsel %vm319, %v773, 0
        %v794 = vsel %vm319, %v774, 0
        %v797 = vsel %vm319, %v775, 0
        %v800 = vsel %vm319, %v776, 0
        %v803 = vsel %vm319, %v777, 0
        %805 = vmatprep.subr.mxu0 0.0
        %806 = vmatpush1.msra.mxu0 %v779
        %807 = vmatprep.subr.mxu0 0.0
        %808 = vmatpush1.msra.mxu0 %v780
        %809 = vmatprep.subr.mxu0 0.0
        %810 = vmatpush1.msra.mxu0 0.0
        %811 = vmatprep.subr.mxu0 0.0
        %812 = vmatpush1.msra.mxu0 0.0
        %813 = vmatprep.subr.mxu0 0.0
        %814 = vmatpush1.msra.mxu0 0.0
        %815 = vmatprep.subr.mxu0 0.0
        %816 = vmatpush1.msra.mxu0 0.0
        %817 = vmatprep.subr.mxu0 0.0
        %818 = vmatpush1.msra.mxu0 0.0
        %819 = vmatprep.subr.mxu0 0.0
        %820 = vmatpush1.msra.mxu0 0.0
        %821 = vmatprep.subr.mxu0 0.0
        %822 = vmatpush1.msra.mxu0 0.0
        %823 = vmatprep.subr.mxu0 0.0
        %824 = vmatpush1.msra.mxu0 0.0
        %825 = vmatprep.subr.mxu0 0.0
        %826 = vmatpush1.msra.mxu0 0.0
        %827 = vmatprep.subr.mxu0 0.0
        %828 = vmatpush1.msra.mxu0 0.0
        %829 = vmatprep.subr.mxu0 0.0
        %830 = vmatpush1.msra.mxu0 0.0
        %831 = vmatprep.subr.mxu0 0.0
        %832 = vmatpush1.msra.mxu0 0.0
        %833 = vmatprep.subr.mxu0 0.0
        %834 = vmatpush1.msra.mxu0 0.0
        %835 = vmatprep.subr.mxu0 0.0
        %836 = vmatpush1.msra.mxu0 0.0
        %837 = vmatprep.subr.mxu0 0.0
        %838 = vmatpush1.msra.mxu0 0.0
        %839 = vmatprep.subr.mxu0 0.0
        %840 = vmatpush1.msra.mxu0 0.0
        %841 = vmatprep.subr.mxu0 0.0
        %842 = vmatpush1.msra.mxu0 0.0
        %843 = vmatprep.subr.mxu0 0.0
        %844 = vmatpush1.msra.mxu0 0.0
        %845 = vmatprep.subr.mxu0 0.0
        %846 = vmatpush1.msra.mxu0 0.0
        %847 = vmatprep.subr.mxu0 0.0
        %848 = vmatpush1.msra.mxu0 0.0
        %849 = vmatprep.subr.mxu0 0.0
        %850 = vmatpush1.msra.mxu0 0.0
        %851 = vmatprep.subr.mxu0 0.0
        %852 = vmatpush1.msra.mxu0 0.0
        %853 = vmatprep.subr.mxu0 0.0
        %854 = vmatpush1.msra.mxu0 0.0
        %855 = vmatprep.subr.mxu0 0.0
        %856 = vmatpush1.msra.mxu0 0.0
        %857 = vmatprep.subr.mxu0 0.0
        %858 = vmatpush1.msra.mxu0 0.0
        %859 = vmatprep.subr.mxu0 0.0
        %860 = vmatpush1.msra.mxu0 0.0
        %861 = vmatprep.subr.mxu0 0.0
        %862 = vmatpush1.msra.mxu0 0.0
        %863 = vmatprep.subr.mxu0 0.0
        %864 = vmatpush1.msra.mxu0 0.0
        %865 = vmatprep.subr.mxu0 0.0
        %866 = vmatpush1.msra.mxu0 0.0
        %867 = vmatprep.subr.mxu0 0.0
        %868 = vmatpush1.msra.mxu0 0.0
        %869 = vmatprep.mubr.f32.mxu0 0.0
        %870 = vmatmul.mubr.f32.gmra.mrb[0].mxu0 %v782
        %v871 = vpop.f32.mrb[0].mxu0
        %v872 = vadd.f32 0.0, %v871
        %v873 = vpop.f32.mrb[0].mxu0
        %874 = vmatprep.mubr.f32.mxu0 0.0
        %875 = vmatmul.mubr.f32.gmra.mrb[0].mxu0 %v785
        %v876 = vpop.f32.mrb[0].mxu0
        %v877 = vadd.f32 0.0, %v876
        %v878 = vpop.f32.mrb[0].mxu0
        %879 = vmatprep.mubr.f32.mxu0 0.0
        %880 = vmatmul.mubr.f32.gmra.mrb[0].mxu0 %v788
        %v881 = vpop.f32.mrb[0].mxu0
        %v882 = vadd.f32 0.0, %v881
        %v883 = vpop.f32.mrb[0].mxu0
        %884 = vmatprep.mubr.f32.mxu0 0.0
        %885 = vmatmul.mubr.f32.gmra.mrb[0].mxu0 %v791
        %v886 = vpop.f32.mrb[0].mxu0
        %v887 = vadd.f32 0.0, %v886
        %v888 = vpop.f32.mrb[0].mxu0
        %889 = vmatprep.mubr.f32.mxu0 0.0
        %890 = vmatmul.mubr.f32.gmra.mrb[0].mxu0 %v794
        %v891 = vpop.f32.mrb[0].mxu0
        %v892 = vadd.f32 0.0, %v891
        %v893 = vpop.f32.mrb[0].mxu0
        %894 = vmatprep.mubr.f32.mxu0 0.0
        %895 = vmatmul.mubr.f32.gmra.mrb[0].mxu0 %v797
        %v896 = vpop.f32.mrb[0].mxu0
        %v897 = vadd.f32 0.0, %v896
        %v898 = vpop.f32.mrb[0].mxu0
        %899 = vmatprep.mubr.f32.mxu0 0.0
        %900 = vmatmul.mubr.f32.gmra.mrb[0].mxu0 %v800
        %v901 = vpop.f32.mrb[0].mxu0
        %v902 = vadd.f32 0.0, %v901
        %v903 = vpop.f32.mrb[0].mxu0
        %904 = vmatprep.mubr.f32.mxu0 0.0
        %905 = vmatmul.mubr.f32.gmra.mrb[0].mxu0 %v803
        %v906 = vpop.f32.mrb[0].mxu0
        %v907 = vadd.f32 0.0, %v906
        %v908 = vpop.f32.mrb[0].mxu0
        %909 = vdwg.mxu0
        %v910 = vadd.f32 %v762, %v872
        %v911 = vadd.f32 %v763, %v877
        %v912 = vadd.f32 %v764, %v882
        %v913 = vadd.f32 %v765, %v887
        %v914 = vadd.f32 %v766, %v892
        %v915 = vadd.f32 %v767, %v897
        %v916 = vadd.f32 %v768, %v902
        %v917 = vadd.f32 %v769, %v907
        %v918 = vld [vmem:[%s3] sm:$0x1]
        %v920 = vlaneseq
        %v921 = vshrl.u32 %v920, 7
        %v922 = vsub.s32 0, %v921
        %v923 = vrot.slane %v918, %v922
        %v925 = vadd.f32 %v910, %v923
        %v926 = vadd.f32 %v911, %v923
        %v927 = vadd.f32 %v912, %v923
        %v928 = vadd.f32 %v913, %v923
        %v929 = vadd.f32 %v914, %v923
        %v930 = vadd.f32 %v915, %v923
        %v931 = vadd.f32 %v916, %v923
        %v932 = vadd.f32 %v917, %v923
        %933 = vst [vmem:[%s267] sm:$0xff] %v925
        %934 = vst [vmem:[%s267 + $0x8] sm:$0xff] %v926
        %935 = vst [vmem:[%s267 + $0x10] sm:$0xff] %v927
        %936 = vst [vmem:[%s267 + $0x18] sm:$0xff] %v928
        %937 = vst [vmem:[%s267 + $0x20] sm:$0xff] %v929
        %938 = vst [vmem:[%s267 + $0x28] sm:$0xff] %v930
        %939 = vst [vmem:[%s267 + $0x30] sm:$0xff] %v931
        %940 = vst [vmem:[%s267 + $0x38] sm:$0xff] %v932
        %s941 = sand.u32 %s142, 1
        %s942 = scalar_lea.sflag [#allocation4], %s941
        %s943 = sand.u32 %s142, 1
        %s944 = smul.addr %s943, 64
        %s945 = scalar_lea.vmem [#allocation3], %s944
        // Predicated region
        $region37: #{tpu_custom_call.1} parent=35 // pred_check
          %p946 = pneg %p152
        $region38: #{tpu_custom_call.1} parent=35 // pred_check_branch
          %948 = sbr.rel (%p946) target = $region40
        $region39: #{tpu_custom_call.1} parent=35 // pred_region
          %s949 = smul.u32 8, %s23
          %s951 = ssub.s32 1024, 1024
          %952 = vsyncadd %s942, %s951
          %s953 = smul.addr %s22, 8
          %s954 = sadd.s32 %s949, %s953
          %s955 = smul.addr %s954, 128
          %s956 = scalar_lea.hbm %s4, %s955
          %s957 = sshll.u32 %s945, 4
          %s958 = int_to_ptr.vmem [resolvable:$true] %s957
          %963 = dma.vmem_to_hbm [thread:$0]  %s958, 1024, %s956, %s942, 128, 128, 8
        $region40: #{tpu_custom_call.1} parent=35 // pred_fallthru
          _
      $region36: #{tpu_custom_call.1} parent=5 // pred_fallthru
        _
      %p964 = scmp.le.s32.totalorder 2, %s13
      // Predicated region
      $region41: #{tpu_custom_call.1} parent=5 // pred_check
        %p965 = pneg %p964
      $region42: #{tpu_custom_call.1} parent=5 // pred_check_branch
        %967 = sbr.rel (%p965) target = $region44
      $region43: #{tpu_custom_call.1} parent=5 // pred_region
        %s968 = ssub.s32 %s13, 2
        // Predicated region
        $region45: #{tpu_custom_call.1} parent=43 // pred_check
          %p969 = pneg %p158
        $region46: #{tpu_custom_call.1} parent=43 // pred_check_branch
          %971 = sbr.rel (%p969) target = $region48
        $region47: #{tpu_custom_call.1} parent=43 // pred_region
          %s972 = sand.u32 %s143, 1
          %s973 = scalar_lea.sflag [#allocation4], %s972
          %s974 = sand.u32 %s143, 1
          %s975 = smul.addr %s974, 64
          %s976 = scalar_lea.vmem [#allocation3], %s975
          %977 = dma.done %s973, 1024
        $region48: #{tpu_custom_call.1} parent=43 // pred_fallthru
          _
      $region44: #{tpu_custom_call.1} parent=5 // pred_fallthru
        _
    $region6: #{tpu_custom_call.1} parent=1 // loop_footer
      %s17 = sadd.s32 1, %s13
    $region7: #{tpu_custom_call.1} parent=1 // loop_footer_branch
      %12 = sbr.rel target = $region3
    $region8: #{tpu_custom_call.1} parent=1 // loop_exit
      _
    %978 = vsyncpa [#allocation4], 1
    %s979 = scalar_lea.sflag [#allocation4], 1
    %980 = vsyncpa %s979, 1

</llo_original>
